<compile_context>
chip_gen: v6e
topology: v6e:2x2x1
jax: 0.10.0
libtpu: 0.0.40
codegen_flags: <defaults>
</compile_context>

<pallas_src>
from functools import partial

import jax
import jax.numpy as jnp
from jax.experimental import pallas as pl
from jax.experimental.pallas import tpu as pltpu

LANE = 128


def _round_up(n, m=LANE):
    return ((n + m - 1) // m) * m


def _pad_to(x, shape):
    pads = [(0, t - s) for s, t in zip(x.shape, shape)]
    if all(p == (0, 0) for p in pads):
        return x
    return jnp.pad(x, pads)


# ----------------------------------------------------------------------------
# Fused Pallas kernel: all conv layers + pool + fc in one invocation
# ----------------------------------------------------------------------------
def _make_fused_kernel(num_layers, c_pad):
    def kernel(a_ref, x_ref, w_ref, s_ref, p_ref, o_ref):
        a = a_ref[...]            # (N, N)   f32, row-normalized mean adjacency
        x = x_ref[...]            # (N, C)   f32, lane-padded node features

        for l in range(num_layers):
            # mean aggregation over in-neighbors (f32 MXU; K <= N is tiny)
            agg = jnp.dot(a, x, preferred_element_type=jnp.float32)
            x_bf = x.astype(jnp.bfloat16)          # cast once, reuse
            agg_bf = agg.astype(jnp.bfloat16)
            wl = w_ref[l, :c_pad, :]               # (C, C) bf16 (BN-folded)
            wr = w_ref[l, c_pad:, :]               # (C, C) bf16 (BN-folded)
            h = (jnp.dot(agg_bf, wl, preferred_element_type=jnp.float32)
                 + jnp.dot(x_bf, wr, preferred_element_type=jnp.float32)
                 + s_ref[pl.ds(l, 1), :])          # folded BN shift + lin_l bias
            x = jnp.maximum(h, 0.0)                # ReLU; dropout identity (eval)

        # global_mean_pool as a pooling matmul, fused with the final Linear
        pooled = jnp.dot(p_ref[...], x, preferred_element_type=jnp.float32)
        o_ref[...] = (jnp.dot(pooled.astype(jnp.bfloat16),
                              w_ref[num_layers, :c_pad, :],
                              preferred_element_type=jnp.float32)
                      + s_ref[pl.ds(num_layers, 1), :])
    return kernel


# ----------------------------------------------------------------------------
# Parameter init (matches PyTorch module structure)
# ----------------------------------------------------------------------------
def init_params(key, num_node_features, hidden_channels, num_classes):
    dims = [num_node_features] + list(hidden_channels)
    params = {"convs": [], "bns": []}
    for i in range(len(hidden_channels)):
        cin, cout = dims[i], dims[i + 1]
        key, k1, k2, k3 = jax.random.split(key, 4)
        params["convs"].append({
            "wl": 0.1 * jax.random.normal(k1, (cin, cout), jnp.float32),
            "wr": 0.1 * jax.random.normal(k2, (cin, cout), jnp.float32),
            "bl": 0.1 * jax.random.normal(k3, (1, cout), jnp.float32),
        })
        # BatchNorm1d init (PyTorch defaults): gamma=1, beta=0, mean=0, var=1
        params["bns"].append({
            "gamma": jnp.ones((1, cout), jnp.float32),
            "beta": jnp.zeros((1, cout), jnp.float32),
            "mean": jnp.zeros((1, cout), jnp.float32),
            "var": jnp.ones((1, cout), jnp.float32),
            "eps": 1e-5,
        })
    key, k1, k2 = jax.random.split(key, 3)
    params["fc_w"] = 0.1 * jax.random.normal(
        k1, (hidden_channels[-1], num_classes), jnp.float32)
    params["fc_b"] = 0.1 * jax.random.normal(k2, (1, num_classes), jnp.float32)
    return params


# ----------------------------------------------------------------------------
# One-time prep: fold eval-mode BN into weights, pad to a common lane-padded
# shape, pack all layers + final Linear into two operands (done OUTSIDE jit).
# ----------------------------------------------------------------------------
def prepare_params(params):
    convs, bns = params["convs"], params["bns"]
    all_dims = [d for c in convs for d in c["wl"].shape] + list(params["fc_w"].shape)
    c_pad = _round_up(max(all_dims))

    w_blocks, shift_rows = [], []
    for conv, bn in zip(convs, bns):
        scale = bn["gamma"] / jnp.sqrt(bn["var"] + bn["eps"])          # (1,Cout)
        shift = bn["beta"] - bn["mean"] * scale + conv["bl"] * scale   # (1,Cout)
        wl = _pad_to(conv["wl"] * scale, (c_pad, c_pad))
        wr = _pad_to(conv["wr"] * scale, (c_pad, c_pad))
        w_blocks.append(jnp.concatenate([wl, wr], axis=0))             # (2C, C)
        shift_rows.append(_pad_to(shift, (1, c_pad)))
    # final Linear: weights in the first C rows, bias as the last shift row
    fc_w = _pad_to(params["fc_w"], (c_pad, c_pad))
    w_blocks.append(jnp.concatenate(
        [fc_w, jnp.zeros((c_pad, c_pad), jnp.float32)], axis=0))
    shift_rows.append(_pad_to(params["fc_b"], (1, c_pad)))

    w_pack = jnp.stack(w_blocks, axis=0).astype(jnp.bfloat16)          # (L+1,2C,C)
    shift_pack = jnp.concatenate(shift_rows, axis=0).astype(jnp.float32)  # (L+1,C)
    return {
        "w_pack": w_pack,
        "shift_pack": shift_pack,
        "num_layers": len(convs),
        "num_classes": params["fc_w"].shape[1],
        "c_pad": c_pad,
    }


# ----------------------------------------------------------------------------
# Graph preprocessing (plain JAX, done once per graph/batch)
# ----------------------------------------------------------------------------
def build_mean_adjacency(edge_index, num_nodes):
    """Dense row-normalized adjacency for SAGEConv mean aggregation."""
    src, dst = edge_index[0], edge_index[1]
    A = jnp.zeros((num_nodes, num_nodes), jnp.float32)
    A = A.at[dst, src].add(1.0)
    deg = jnp.sum(A, axis=1, keepdims=True)
    A = jnp.where(deg > 0, A / jnp.maximum(deg, 1.0), 0.0)
    return A


def build_pool_matrix(batch, num_graphs, num_nodes):
    onehot = (batch[None, :] == jnp.arange(num_graphs)[:, None]).astype(jnp.float32)
    counts = jnp.sum(onehot, axis=1, keepdims=True)
    return onehot / jnp.maximum(counts, 1.0)


# ----------------------------------------------------------------------------
# Forward (single fused Pallas kernel; weights already folded/packed)
# ----------------------------------------------------------------------------
@partial(jax.jit, static_argnames=("num_layers", "num_classes", "c_pad"))
def _gcn_forward_jit(w_pack, shift_pack, x, A, P, *,
                     num_layers, num_classes, c_pad):
    N = x.shape[0]
    G = P.shape[0]
    x_p = _pad_to(x.astype(jnp.float32), (N, c_pad))
    vmem = pl.BlockSpec(memory_space=pltpu.MemorySpace.VMEM)
    out = pl.pallas_call(
        _make_fused_kernel(num_layers, c_pad),
        out_shape=jax.ShapeDtypeStruct((G, c_pad), jnp.float32),
        in_specs=[vmem] * 5,
        out_specs=vmem,
    )(A, x_p, w_pack, shift_pack, P)
    return out[:, :num_classes]


def gcn_forward(prepared, x, A, P):
    return _gcn_forward_jit(
        prepared["w_pack"], prepared["shift_pack"], x, A, P,
        num_layers=prepared["num_layers"],
        num_classes=prepared["num_classes"],
        c_pad=prepared["c_pad"])


# ----------------------------------------------------------------------------
# main
# ----------------------------------------------------------------------------
if __name__ == "__main__":
    key = jax.random.PRNGKey(0)

    num_nodes = 16
    num_node_features = 8
    hidden_channels = [32, 16]
    num_classes = 4
    num_graphs = 2
    num_edges = 40

    key, kx, ke = jax.random.split(key, 3)
    x = jax.random.normal(kx, (num_nodes, num_node_features), jnp.float32)
    edge_index = jax.random.randint(ke, (2, num_edges), 0, num_nodes, jnp.int32)
    batch = jnp.concatenate([
        jnp.zeros((num_nodes // 2,), jnp.int32),
        jnp.ones((num_nodes - num_nodes // 2,), jnp.int32),
    ])

    params = init_params(key, num_node_features, hidden_channels, num_classes)

    A = build_mean_adjacency(edge_index, num_nodes)
    P = build_pool_matrix(batch, num_graphs, num_nodes)

    # One-time BN folding / padding / packing -- outside the per-call jit.
    prepared = prepare_params(params)

    out = gcn_forward(prepared, x, A, P)
    out = jax.block_until_ready(out)
    assert out.shape == (num_graphs, num_classes)
    print("KERNEL_OK")
</pallas_src>

<mosaic_0001>
module attributes {stable_mosaic.version = 11 : i64} {
  func.func @kernel(%arg0: memref<16x16xf32, #tpu.memory_space<vmem>>, %arg1: memref<16x128xf32, #tpu.memory_space<vmem>>, %arg2: memref<3x256x128xbf16, #tpu.memory_space<vmem>>, %arg3: memref<3x128xf32, #tpu.memory_space<vmem>>, %arg4: memref<2x16xf32, #tpu.memory_space<vmem>>, %arg5: memref<2x128xf32, #tpu.memory_space<vmem>>) attributes {dimension_semantics = [], scalar_prefetch = 0 : i64, scratch_operands = 0 : i64, tpu.core_type = #tpu.core_type<tc>} {
    %c0 = arith.constant 0 : index
    %c0_0 = arith.constant 0 : index
    %0 = vector.load %arg0[%c0, %c0_0] : memref<16x16xf32, #tpu.memory_space<vmem>>, vector<16x16xf32>
    %c0_1 = arith.constant 0 : index
    %c0_2 = arith.constant 0 : index
    %1 = vector.load %arg1[%c0_1, %c0_2] : memref<16x128xf32, #tpu.memory_space<vmem>>, vector<16x128xf32>
    %cst = arith.constant dense<0.000000e+00> : vector<16x128xf32>
    %2 = tpu.matmul %0, %1, %cst {dimension_numbers = #tpu.dot_dimension_numbers<[1], [0], [0], [1], [0, 0, 1, 1], [], []>} : vector<16x16xf32>, vector<16x128xf32>, vector<16x128xf32> -> vector<16x128xf32>
    %3 = arith.truncf %1 : vector<16x128xf32> to vector<16x128xbf16>
    %4 = arith.truncf %2 : vector<16x128xf32> to vector<16x128xbf16>
    %c0_3 = arith.constant 0 : index
    %c0_4 = arith.constant 0 : index
    %c0_5 = arith.constant 0 : index
    %5 = vector.load %arg2[%c0_3, %c0_4, %c0_5] : memref<3x256x128xbf16, #tpu.memory_space<vmem>>, vector<1x128x128xbf16>
    %6 = vector.shape_cast %5 : vector<1x128x128xbf16> to vector<128x128xbf16>
    %c0_6 = arith.constant 0 : index
    %c128 = arith.constant 128 : index
    %c0_7 = arith.constant 0 : index
    %7 = vector.load %arg2[%c0_6, %c128, %c0_7] : memref<3x256x128xbf16, #tpu.memory_space<vmem>>, vector<1x128x128xbf16>
    %8 = vector.shape_cast %7 : vector<1x128x128xbf16> to vector<128x128xbf16>
    %cst_8 = arith.constant dense<0.000000e+00> : vector<16x128xf32>
    %9 = tpu.matmul %4, %6, %cst_8 {dimension_numbers = #tpu.dot_dimension_numbers<[1], [0], [0], [1], [0, 0, 1, 1], [], []>} : vector<16x128xbf16>, vector<128x128xbf16>, vector<16x128xf32> -> vector<16x128xf32>
    %cst_9 = arith.constant dense<0.000000e+00> : vector<16x128xf32>
    %10 = tpu.matmul %3, %8, %cst_9 {dimension_numbers = #tpu.dot_dimension_numbers<[1], [0], [0], [1], [0, 0, 1, 1], [], []>} : vector<16x128xbf16>, vector<128x128xbf16>, vector<16x128xf32> -> vector<16x128xf32>
    %11 = arith.addf %9, %10 : vector<16x128xf32>
    %c0_10 = arith.constant 0 : index
    %c0_11 = arith.constant 0 : index
    %12 = vector.load %arg3[%c0_10, %c0_11] : memref<3x128xf32, #tpu.memory_space<vmem>>, vector<1x128xf32>
    %13 = vector.broadcast %12 : vector<1x128xf32> to vector<16x128xf32>
    %14 = arith.addf %11, %13 : vector<16x128xf32>
    %cst_12 = arith.constant 0.000000e+00 : f32
    %15 = vector.broadcast %cst_12 : f32 to vector<16x128xf32>
    %16 = arith.maximumf %14, %15 : vector<16x128xf32>
    %cst_13 = arith.constant dense<0.000000e+00> : vector<16x128xf32>
    %17 = tpu.matmul %0, %16, %cst_13 {dimension_numbers = #tpu.dot_dimension_numbers<[1], [0], [0], [1], [0, 0, 1, 1], [], []>} : vector<16x16xf32>, vector<16x128xf32>, vector<16x128xf32> -> vector<16x128xf32>
    %18 = arith.truncf %16 : vector<16x128xf32> to vector<16x128xbf16>
    %19 = arith.truncf %17 : vector<16x128xf32> to vector<16x128xbf16>
    %c1 = arith.constant 1 : index
    %c0_14 = arith.constant 0 : index
    %c0_15 = arith.constant 0 : index
    %20 = vector.load %arg2[%c1, %c0_14, %c0_15] : memref<3x256x128xbf16, #tpu.memory_space<vmem>>, vector<1x128x128xbf16>
    %21 = vector.shape_cast %20 : vector<1x128x128xbf16> to vector<128x128xbf16>
    %c1_16 = arith.constant 1 : index
    %c128_17 = arith.constant 128 : index
    %c0_18 = arith.constant 0 : index
    %22 = vector.load %arg2[%c1_16, %c128_17, %c0_18] : memref<3x256x128xbf16, #tpu.memory_space<vmem>>, vector<1x128x128xbf16>
    %23 = vector.shape_cast %22 : vector<1x128x128xbf16> to vector<128x128xbf16>
    %cst_19 = arith.constant dense<0.000000e+00> : vector<16x128xf32>
    %24 = tpu.matmul %19, %21, %cst_19 {dimension_numbers = #tpu.dot_dimension_numbers<[1], [0], [0], [1], [0, 0, 1, 1], [], []>} : vector<16x128xbf16>, vector<128x128xbf16>, vector<16x128xf32> -> vector<16x128xf32>
    %cst_20 = arith.constant dense<0.000000e+00> : vector<16x128xf32>
    %25 = tpu.matmul %18, %23, %cst_20 {dimension_numbers = #tpu.dot_dimension_numbers<[1], [0], [0], [1], [0, 0, 1, 1], [], []>} : vector<16x128xbf16>, vector<128x128xbf16>, vector<16x128xf32> -> vector<16x128xf32>
    %26 = arith.addf %24, %25 : vector<16x128xf32>
    %c1_21 = arith.constant 1 : index
    %c0_22 = arith.constant 0 : index
    %27 = vector.load %arg3[%c1_21, %c0_22] : memref<3x128xf32, #tpu.memory_space<vmem>>, vector<1x128xf32>
    %28 = vector.broadcast %27 : vector<1x128xf32> to vector<16x128xf32>
    %29 = arith.addf %26, %28 : vector<16x128xf32>
    %cst_23 = arith.constant 0.000000e+00 : f32
    %30 = vector.broadcast %cst_23 : f32 to vector<16x128xf32>
    %31 = arith.maximumf %29, %30 : vector<16x128xf32>
    %c0_24 = arith.constant 0 : index
    %c0_25 = arith.constant 0 : index
    %32 = vector.load %arg4[%c0_24, %c0_25] : memref<2x16xf32, #tpu.memory_space<vmem>>, vector<2x16xf32>
    %cst_26 = arith.constant dense<0.000000e+00> : vector<2x128xf32>
    %33 = tpu.matmul %32, %31, %cst_26 {dimension_numbers = #tpu.dot_dimension_numbers<[1], [0], [0], [1], [0, 0, 1, 1], [], []>} : vector<2x16xf32>, vector<16x128xf32>, vector<2x128xf32> -> vector<2x128xf32>
    %34 = arith.truncf %33 : vector<2x128xf32> to vector<2x128xbf16>
    %c2 = arith.constant 2 : index
    %c0_27 = arith.constant 0 : index
    %c0_28 = arith.constant 0 : index
    %35 = vector.load %arg2[%c2, %c0_27, %c0_28] : memref<3x256x128xbf16, #tpu.memory_space<vmem>>, vector<1x128x128xbf16>
    %36 = vector.shape_cast %35 : vector<1x128x128xbf16> to vector<128x128xbf16>
    %cst_29 = arith.constant dense<0.000000e+00> : vector<2x128xf32>
    %37 = tpu.matmul %34, %36, %cst_29 {dimension_numbers = #tpu.dot_dimension_numbers<[1], [0], [0], [1], [0, 0, 1, 1], [], []>} : vector<2x128xbf16>, vector<128x128xbf16>, vector<2x128xf32> -> vector<2x128xf32>
    %c2_30 = arith.constant 2 : index
    %c0_31 = arith.constant 0 : index
    %38 = vector.load %arg3[%c2_30, %c0_31] : memref<3x128xf32, #tpu.memory_space<vmem>>, vector<1x128xf32>
    %39 = vector.broadcast %38 : vector<1x128xf32> to vector<2x128xf32>
    %40 = arith.addf %37, %39 : vector<2x128xf32>
    %c0_32 = arith.constant 0 : index
    %c0_33 = arith.constant 0 : index
    %41 = vector.load %arg5[%c0_32, %c0_33] : memref<2x128xf32, #tpu.memory_space<vmem>>, vector<2x128xf32>
    tpu.vector_store %arg5[%c0_32, %c0_33], %40 {strides = array<i32>} : memref<2x128xf32, #tpu.memory_space<vmem>>, vector<2x128xf32>,
    return
  }
}

</mosaic_0001>

<llo_original>
// kernel: _gcn_forward_jit.1
$region0: #{_gcn_forward_jit.1}
  #allocation0 [shape = 'u32[]', space=smem, size = 0x4, offset = 0x4, fixed_abs, tag = 'smem constant byte address 0x4 - core index']
  #allocation1 [shape = 'u32[144,128]{1,0:T(1,128)}', space=vmem, size = 0x12000, scoped, tag = 'internal scratch']
  %s0 = inlined_call_operand.vmem [shape: f32[16,16], index: 0, kind: input, shape index: {}]
  %s1 = inlined_call_operand.vmem [shape: f32[16,128], index: 1, kind: input, shape index: {}]
  %s2 = inlined_call_operand.hbm [shape: bf16[3,256,128], index: 2, kind: input, shape index: {}]
  %s3 = inlined_call_operand.vmem [shape: f32[3,128], index: 3, kind: input, shape index: {}]
  %s4 = inlined_call_operand.vmem [shape: f32[2,16], index: 4, kind: input, shape index: {}]
  %s5 = inlined_call_operand.hbm [shape: f32[2,128], index: 5, kind: output, shape index: {}]
  %s6 = sld [smem:[#allocation0]]
  $region34: #{_gcn_forward_jit.1} parent=0
    _
  %s8 = ssub.s32 1, %s6
  %s9 = scalar_select 0, %s8, %s6
  $region1: #{_gcn_forward_jit.1} parent=0
    #allocation2 [shape = 'u8[196608]{0}', space=vmem, size = 0x30000, scoped, tag = 'input window, operand 2, single buffered']
    #allocation3 [shape = 's32[1]{0}', space=sflag, size = 0x4, scoped, tag = 'scoped memory for _gcn_forward_jit.1']
    #allocation4 [shape = 's32[1]{0}', space=sflag, size = 0x4, scoped, tag = 'scoped memory for _gcn_forward_jit.1']
    #allocation5 [shape = 'u8[1024]{0}', space=vmem, size = 0x400, scoped, tag = 'output window, operand 0, single buffered']
    %10 = vsyncpa [#allocation3], 0
    %11 = vsyncpa [#allocation4], 0
    // Predicated region
    $region2: #{_gcn_forward_jit.1} parent=1 // pred_check
      _
    $region3: #{_gcn_forward_jit.1} parent=1 // pred_check_branch
      %13 = sbr.rel (0) target = $region5
    $region4: #{_gcn_forward_jit.1} parent=1 // pred_region
      _
    $region5: #{_gcn_forward_jit.1} parent=1 // pred_fallthru
      _
    // Predicated region
    $region6: #{_gcn_forward_jit.1} parent=1 // pred_check
      _
    $region7: #{_gcn_forward_jit.1} parent=1 // pred_check_branch
      %15 = sbr.rel (0) target = $region9
    $region8: #{_gcn_forward_jit.1} parent=1 // pred_region
      _
    $region9: #{_gcn_forward_jit.1} parent=1 // pred_fallthru
      _
    // Predicated region
    $region10: #{_gcn_forward_jit.1} parent=1 // pred_check
      _
    $region11: #{_gcn_forward_jit.1} parent=1 // pred_check_branch
      %17 = sbr.rel (0) target = $region13
    $region12: #{_gcn_forward_jit.1} parent=1 // pred_region
      %s19 = ssub.s32 6144, 6144
      %20 = vsyncadd [#allocation3], %s19
      %s21 = sshll.u32 [#allocation2], 4
      %s22 = int_to_ptr.vmem [resolvable:$true] %s21
      %27 = dma.hbm_to_vmem [thread:$0]  %s2, 6144, %s22, [#allocation3], 64, 64, 4
    $region13: #{_gcn_forward_jit.1} parent=1 // pred_fallthru
      _
    // Predicated region
    $region14: #{_gcn_forward_jit.1} parent=1 // pred_check
      _
    $region15: #{_gcn_forward_jit.1} parent=1 // pred_check_branch
      %29 = sbr.rel (0) target = $region17
    $region16: #{_gcn_forward_jit.1} parent=1 // pred_region
      _
    $region17: #{_gcn_forward_jit.1} parent=1 // pred_fallthru
      _
    // Predicated region
    $region18: #{_gcn_forward_jit.1} parent=1 // pred_check
      _
    $region19: #{_gcn_forward_jit.1} parent=1 // pred_check_branch
      %31 = sbr.rel (0) target = $region21
    $region20: #{_gcn_forward_jit.1} parent=1 // pred_region
      _
    $region21: #{_gcn_forward_jit.1} parent=1 // pred_fallthru
      _
    // Predicated region
    $region22: #{_gcn_forward_jit.1} parent=1 // pred_check
      _
    $region23: #{_gcn_forward_jit.1} parent=1 // pred_check_branch
      %33 = sbr.rel (0) target = $region25
    $region24: #{_gcn_forward_jit.1} parent=1 // pred_region
      %34 = dma.done [#allocation3], 6144
    $region25: #{_gcn_forward_jit.1} parent=1 // pred_fallthru
      _
    %v36 = vld [vmem:[%s0] sm:$0xff]
    %v37 = vld [vmem:[%s0 + $0x8] sm:$0xff]
    %v38 = vld [vmem:[%s1] sm:$0xff]
    %v39 = vld [vmem:[%s1 + $0x8] sm:$0xff]
    %vm40 = vcmask 130048
    %v42 = vsel %vm40, %v36, 0
    %v45 = vsel %vm40, %v37, 0
    %47 = vmatprep.subr.mxu0 0.0
    %48 = vmatpush1.msra.mxu0 0.0
    %49 = vmatprep.subr.mxu0 0.0
    %50 = vmatpush1.msra.mxu0 0.0
    %51 = vmatprep.subr.mxu0 0.0
    %52 = vmatpush1.msra.mxu0 0.0
    %53 = vmatprep.subr.mxu0 0.0
    %54 = vmatpush1.msra.mxu0 0.0
    %55 = vmatprep.subr.mxu0 0.0
    %56 = vmatpush1.msra.mxu0 0.0
    %57 = vmatprep.subr.mxu0 0.0
    %58 = vmatpush1.msra.mxu0 0.0
    %59 = vmatprep.subr.mxu0 0.0
    %60 = vmatpush1.msra.mxu0 0.0
    %61 = vmatprep.subr.mxu0 0.0
    %62 = vmatpush1.msra.mxu0 0.0
    %63 = vmatprep.subr.mxu0 0.0
    %64 = vmatpush1.msra.mxu0 0.0
    %65 = vmatprep.subr.mxu0 0.0
    %66 = vmatpush1.msra.mxu0 0.0
    %67 = vmatprep.subr.mxu0 0.0
    %68 = vmatpush1.msra.mxu0 0.0
    %69 = vmatprep.subr.mxu0 0.0
    %70 = vmatpush1.msra.mxu0 0.0
    %71 = vmatprep.subr.mxu0 0.0
    %72 = vmatpush1.msra.mxu0 0.0
    %73 = vmatprep.subr.mxu0 0.0
    %74 = vmatpush1.msra.mxu0 0.0
    %75 = vmatprep.subr.mxu0 0.0
    %76 = vmatpush1.msra.mxu0 %v39
    %77 = vmatprep.subr.mxu0 0.0
    %78 = vmatpush1.msra.mxu0 %v38
    %79 = vmatprep.subr.mxu0 0.0
    %80 = vmatpush2.msra.mxu0 0.0
    %81 = vmatprep.subr.mxu0 0.0
    %82 = vmatpush2.msra.mxu0 0.0
    %83 = vmatprep.subr.mxu0 0.0
    %84 = vmatpush2.msra.mxu0 0.0
    %85 = vmatprep.subr.mxu0 0.0
    %86 = vmatpush2.msra.mxu0 0.0
    %87 = vmatprep.subr.mxu0 0.0
    %88 = vmatpush2.msra.mxu0 0.0
    %89 = vmatprep.subr.mxu0 0.0
    %90 = vmatpush2.msra.mxu0 0.0
    %91 = vmatprep.subr.mxu0 0.0
    %92 = vmatpush2.msra.mxu0 0.0
    %93 = vmatprep.subr.mxu0 0.0
    %94 = vmatpush2.msra.mxu0 0.0
    %95 = vmatprep.subr.mxu0 0.0
    %96 = vmatpush2.msra.mxu0 0.0
    %97 = vmatprep.subr.mxu0 0.0
    %98 = vmatpush2.msra.mxu0 0.0
    %99 = vmatprep.subr.mxu0 0.0
    %100 = vmatpush2.msra.mxu0 0.0
    %101 = vmatprep.subr.mxu0 0.0
    %102 = vmatpush2.msra.mxu0 0.0
    %103 = vmatprep.subr.mxu0 0.0
    %104 = vmatpush2.msra.mxu0 0.0
    %105 = vmatprep.subr.mxu0 0.0
    %106 = vmatpush2.msra.mxu0 0.0
    %107 = vmatprep.subr.mxu0 0.0
    %108 = vmatpush2.msra.mxu0 0.0
    %109 = vmatprep.subr.mxu0 0.0
    %110 = vmatpush2.msra.mxu0 0.0
    %111 = vmatprep.mubr.f32.mxu0 0.0
    %112 = vmatmul.mubr.f32.gmra.mxu0 %v42
    %v113 = vpop.f32.mrf.mxu0
    %v114 = vadd.f32 0.0, %v113
    %v115 = vpop.f32.mrf.mxu0
    %116 = vmatprep.mubr.f32.mxu0 0.0
    %117 = vmatmul.mubr.f32.gmra.mxu0 %v45
    %v118 = vpop.f32.mrf.mxu0
    %v119 = vadd.f32 0.0, %v118
    %v120 = vpop.f32.mrf.mxu0
    %121 = vdwg.mxu0
    %v122 = vpack.c.bf16 %v39, %v38
    %v123 = vpack.c.bf16 %v119, %v114
    %v124 = vld [vmem:[#allocation2] sm:$0xf]
    %v125 = vld [vmem:[#allocation2 + $0x4] sm:$0xf]
    %v126 = vld [vmem:[#allocation2 + $0x8] sm:$0xf]
    %v127 = vld [vmem:[#allocation2 + $0xc] sm:$0xf]
    %v128 = vld [vmem:[#allocation2 + $0x10] sm:$0xf]
    %v129 = vld [vmem:[#allocation2 + $0x14] sm:$0xf]
    %v130 = vld [vmem:[#allocation2 + $0x18] sm:$0xf]
    %v131 = vld [vmem:[#allocation2 + $0x1c] sm:$0xf]
    %v132 = vld [vmem:[#allocation2 + $0x20] sm:$0xf]
    %v133 = vld [vmem:[#allocation2 + $0x24] sm:$0xf]
    %v134 = vld [vmem:[#allocation2 + $0x28] sm:$0xf]
    %v135 = vld [vmem:[#allocation2 + $0x2c] sm:$0xf]
    %v136 = vld [vmem:[#allocation2 + $0x30] sm:$0xf]
    %v137 = vld [vmem:[#allocation2 + $0x34] sm:$0xf]
    %v138 = vld [vmem:[#allocation2 + $0x38] sm:$0xf]
    %v139 = vld [vmem:[#allocation2 + $0x3c] sm:$0xf]
    %v140 = vld [vmem:[#allocation2 + $0x40] sm:$0xf]
    %v141 = vld [vmem:[#allocation2 + $0x44] sm:$0xf]
    %v142 = vld [vmem:[#allocation2 + $0x48] sm:$0xf]
    %v143 = vld [vmem:[#allocation2 + $0x4c] sm:$0xf]
    %v144 = vld [vmem:[#allocation2 + $0x50] sm:$0xf]
    %v145 = vld [vmem:[#allocation2 + $0x54] sm:$0xf]
    %v146 = vld [vmem:[#allocation2 + $0x58] sm:$0xf]
    %v147 = vld [vmem:[#allocation2 + $0x5c] sm:$0xf]
    %v148 = vld [vmem:[#allocation2 + $0x60] sm:$0xf]
    %v149 = vld [vmem:[#allocation2 + $0x64] sm:$0xf]
    %v150 = vld [vmem:[#allocation2 + $0x68] sm:$0xf]
    %v151 = vld [vmem:[#allocation2 + $0x6c] sm:$0xf]
    %v152 = vld [vmem:[#allocation2 + $0x70] sm:$0xf]
    %v153 = vld [vmem:[#allocation2 + $0x74] sm:$0xf]
    %v154 = vld [vmem:[#allocation2 + $0x78] sm:$0xf]
    %v155 = vld [vmem:[#allocation2 + $0x7c] sm:$0xf]
    %v172 = vunpack.c.l.b16 %v140
    %v173 = vunpack.c.l.b16 %v141
    %v174 = vunpack.c.l.b16 %v142
    %v175 = vunpack.c.l.b16 %v143
    %v176 = vunpack.c.l.b16 %v144
    %v177 = vunpack.c.l.b16 %v145
    %v178 = vunpack.c.l.b16 %v146
    %v179 = vunpack.c.l.b16 %v147
    %v180 = vunpack.c.l.b16 %v148
    %v181 = vunpack.c.l.b16 %v149
    %v182 = vunpack.c.l.b16 %v150
    %v183 = vunpack.c.l.b16 %v151
    %v184 = vunpack.c.l.b16 %v152
    %v185 = vunpack.c.l.b16 %v153
    %v186 = vunpack.c.l.b16 %v154
    %v187 = vunpack.c.l.b16 %v155
    %v188 = vpack.c.b16 %v173, %v172
    %v189 = vpack.c.b16 %v175, %v174
    %v190 = vpack.c.b16 %v177, %v176
    %v191 = vpack.c.b16 %v179, %v178
    %v192 = vpack.c.b16 %v181, %v180
    %v193 = vpack.c.b16 %v183, %v182
    %v194 = vpack.c.b16 %v185, %v184
    %v195 = vpack.c.b16 %v187, %v186
    %204 = vmatprep.subr.bf16.mxu0 0
    %205 = vmatpush1.bf16.msra.mxu0 %v195
    %206 = vmatprep.subr.bf16.mxu0 0
    %207 = vmatpush1.bf16.msra.mxu0 %v194
    %208 = vmatprep.subr.bf16.mxu0 0
    %209 = vmatpush1.bf16.msra.mxu0 %v193
    %210 = vmatprep.subr.bf16.mxu0 0
    %211 = vmatpush1.bf16.msra.mxu0 %v192
    %212 = vmatprep.subr.bf16.mxu0 0
    %213 = vmatpush1.bf16.msra.mxu0 %v191
    %214 = vmatprep.subr.bf16.mxu0 0
    %215 = vmatpush1.bf16.msra.mxu0 %v190
    %216 = vmatprep.subr.bf16.mxu0 0
    %217 = vmatpush1.bf16.msra.mxu0 %v189
    %218 = vmatprep.subr.bf16.mxu0 0
    %219 = vmatpush1.bf16.msra.mxu0 %v188
    %220 = vmatprep.subr.bf16.mxu0 0
    %221 = vmatpush2.bf16.msra.mxu0 0
    %222 = vmatprep.subr.bf16.mxu0 0
    %223 = vmatpush2.bf16.msra.mxu0 0
    %224 = vmatprep.subr.bf16.mxu0 0
    %225 = vmatpush2.bf16.msra.mxu0 0
    %226 = vmatprep.subr.bf16.mxu0 0
    %227 = vmatpush2.bf16.msra.mxu0 0
    %228 = vmatprep.subr.bf16.mxu0 0
    %229 = vmatpush2.bf16.msra.mxu0 0
    %230 = vmatprep.subr.bf16.mxu0 0
    %231 = vmatpush2.bf16.msra.mxu0 0
    %232 = vmatprep.subr.bf16.mxu0 0
    %233 = vmatpush2.bf16.msra.mxu0 0
    %234 = vmatprep.subr.bf16.mxu0 0
    %235 = vmatpush2.bf16.msra.mxu0 0
    %236 = vmatprep.mubr.bf16.mxu0 0
    %237 = vmatmul.mubr.bf16.gmra.mxu0 %v122
    %v238 = vpop.f32.mrf.mxu0
    %v239 = vadd.f32 0.0, %v238
    %v240 = vpop.f32.mrf.mxu0
    %v241 = vpop.f32.mrf.mxu0
    %v242 = vadd.f32 0.0, %v241
    %v243 = vpop.f32.mrf.mxu0
    %244 = vdwg.mxu0
    %v261 = vunpack.c.l.b16 %v124
    %v262 = vunpack.c.l.b16 %v125
    %v263 = vunpack.c.l.b16 %v126
    %v264 = vunpack.c.l.b16 %v127
    %v265 = vunpack.c.l.b16 %v128
    %v266 = vunpack.c.l.b16 %v129
    %v267 = vunpack.c.l.b16 %v130
    %v268 = vunpack.c.l.b16 %v131
    %v269 = vunpack.c.l.b16 %v132
    %v270 = vunpack.c.l.b16 %v133
    %v271 = vunpack.c.l.b16 %v134
    %v272 = vunpack.c.l.b16 %v135
    %v273 = vunpack.c.l.b16 %v136
    %v274 = vunpack.c.l.b16 %v137
    %v275 = vunpack.c.l.b16 %v138
    %v276 = vunpack.c.l.b16 %v139
    %v277 = vpack.c.b16 %v262, %v261
    %v278 = vpack.c.b16 %v264, %v263
    %v279 = vpack.c.b16 %v266, %v265
    %v280 = vpack.c.b16 %v268, %v267
    %v281 = vpack.c.b16 %v270, %v269
    %v282 = vpack.c.b16 %v272, %v271
    %v283 = vpack.c.b16 %v274, %v273
    %v284 = vpack.c.b16 %v276, %v275
    %293 = vmatprep.subr.bf16.mxu0 0
    %294 = vmatpush1.bf16.msra.mxu0 %v284
    %295 = vmatprep.subr.bf16.mxu0 0
    %296 = vmatpush1.bf16.msra.mxu0 %v283
    %297 = vmatprep.subr.bf16.mxu0 0
    %298 = vmatpush1.bf16.msra.mxu0 %v282
    %299 = vmatprep.subr.bf16.mxu0 0
    %300 = vmatpush1.bf16.msra.mxu0 %v281
    %301 = vmatprep.subr.bf16.mxu0 0
    %302 = vmatpush1.bf16.msra.mxu0 %v280
    %303 = vmatprep.subr.bf16.mxu0 0
    %304 = vmatpush1.bf16.msra.mxu0 %v279
    %305 = vmatprep.subr.bf16.mxu0 0
    %306 = vmatpush1.bf16.msra.mxu0 %v278
    %307 = vmatprep.subr.bf16.mxu0 0
    %308 = vmatpush1.bf16.msra.mxu0 %v277
    %309 = vmatprep.subr.bf16.mxu0 0
    %310 = vmatpush2.bf16.msra.mxu0 0
    %311 = vmatprep.subr.bf16.mxu0 0
    %312 = vmatpush2.bf16.msra.mxu0 0
    %313 = vmatprep.subr.bf16.mxu0 0
    %314 = vmatpush2.bf16.msra.mxu0 0
    %315 = vmatprep.subr.bf16.mxu0 0
    %316 = vmatpush2.bf16.msra.mxu0 0
    %317 = vmatprep.subr.bf16.mxu0 0
    %318 = vmatpush2.bf16.msra.mxu0 0
    %319 = vmatprep.subr.bf16.mxu0 0
    %320 = vmatpush2.bf16.msra.mxu0 0
    %321 = vmatprep.subr.bf16.mxu0 0
    %322 = vmatpush2.bf16.msra.mxu0 0
    %323 = vmatprep.subr.bf16.mxu0 0
    %324 = vmatpush2.bf16.msra.mxu0 0
    %325 = vmatprep.mubr.bf16.mxu0 0
    %326 = vmatmul.mubr.bf16.gmra.mxu0 %v123
    %v327 = vpop.f32.mrf.mxu0
    %v328 = vadd.f32 %v239, %v327
    %v329 = vpop.f32.mrf.mxu0
    %v330 = vpop.f32.mrf.mxu0
    %v331 = vadd.f32 %v242, %v330
    %v332 = vpop.f32.mrf.mxu0
    %333 = vdwg.mxu0
    %v334 = vld [vmem:[%s3] sm:$0x1]
    %v335 = vlaneseq
    %v336 = vshrl.u32 %v335, 7
    %v337 = vsub.s32 0, %v336
    %v338 = vrot.slane %v334, %v337
    %v339 = vadd.f32 %v328, %v338
    %v340 = vadd.f32 %v331, %v338
    %v341 = vmax.f32 %v339, 0.0
    %v342 = vmax.f32 %v340, 0.0
    %343 = vmatprep.subr.mxu0 0.0
    %344 = vmatpush1.msra.mxu0 0.0
    %345 = vmatprep.subr.mxu0 0.0
    %346 = vmatpush1.msra.mxu0 0.0
    %347 = vmatprep.subr.mxu0 0.0
    %348 = vmatpush1.msra.mxu0 0.0
    %349 = vmatprep.subr.mxu0 0.0
    %350 = vmatpush1.msra.mxu0 0.0
    %351 = vmatprep.subr.mxu0 0.0
    %352 = vmatpush1.msra.mxu0 0.0
    %353 = vmatprep.subr.mxu0 0.0
    %354 = vmatpush1.msra.mxu0 0.0
    %355 = vmatprep.subr.mxu0 0.0
    %356 = vmatpush1.msra.mxu0 0.0
    %357 = vmatprep.subr.mxu0 0.0
    %358 = vmatpush1.msra.mxu0 0.0
    %359 = vmatprep.subr.mxu0 0.0
    %360 = vmatpush1.msra.mxu0 0.0
    %361 = vmatprep.subr.mxu0 0.0
    %362 = vmatpush1.msra.mxu0 0.0
    %363 = vmatprep.subr.mxu0 0.0
    %364 = vmatpush1.msra.mxu0 0.0
    %365 = vmatprep.subr.mxu0 0.0
    %366 = vmatpush1.msra.mxu0 0.0
    %367 = vmatprep.subr.mxu0 0.0
    %368 = vmatpush1.msra.mxu0 0.0
    %369 = vmatprep.subr.mxu0 0.0
    %370 = vmatpush1.msra.mxu0 0.0
    %371 = vmatprep.subr.mxu0 0.0
    %372 = vmatpush1.msra.mxu0 %v342
    %373 = vmatprep.subr.mxu0 0.0
    %374 = vmatpush1.msra.mxu0 %v341
    %375 = vmatprep.subr.mxu0 0.0
    %376 = vmatpush2.msra.mxu0 0.0
    %377 = vmatprep.subr.mxu0 0.0
    %378 = vmatpush2.msra.mxu0 0.0
    %379 = vmatprep.subr.mxu0 0.0
    %380 = vmatpush2.msra.mxu0 0.0
    %381 = vmatprep.subr.mxu0 0.0
    %382 = vmatpush2.msra.mxu0 0.0
    %383 = vmatprep.subr.mxu0 0.0
    %384 = vmatpush2.msra.mxu0 0.0
    %385 = vmatprep.subr.mxu0 0.0
    %386 = vmatpush2.msra.mxu0 0.0
    %387 = vmatprep.subr.mxu0 0.0
    %388 = vmatpush2.msra.mxu0 0.0
    %389 = vmatprep.subr.mxu0 0.0
    %390 = vmatpush2.msra.mxu0 0.0
    %391 = vmatprep.subr.mxu0 0.0
    %392 = vmatpush2.msra.mxu0 0.0
    %393 = vmatprep.subr.mxu0 0.0
    %394 = vmatpush2.msra.mxu0 0.0
    %395 = vmatprep.subr.mxu0 0.0
    %396 = vmatpush2.msra.mxu0 0.0
    %397 = vmatprep.subr.mxu0 0.0
    %398 = vmatpush2.msra.mxu0 0.0
    %399 = vmatprep.subr.mxu0 0.0
    %400 = vmatpush2.msra.mxu0 0.0
    %401 = vmatprep.subr.mxu0 0.0
    %402 = vmatpush2.msra.mxu0 0.0
    %403 = vmatprep.subr.mxu0 0.0
    %404 = vmatpush2.msra.mxu0 0.0
    %405 = vmatprep.subr.mxu0 0.0
    %406 = vmatpush2.msra.mxu0 0.0
    %407 = vmatprep.mubr.f32.mxu0 0.0
    %408 = vmatmul.mubr.f32.gmra.mxu0 %v42
    %v409 = vpop.f32.mrf.mxu0
    %v410 = vadd.f32 0.0, %v409
    %v411 = vpop.f32.mrf.mxu0
    %412 = vmatprep.mubr.f32.mxu0 0.0
    %413 = vmatmul.mubr.f32.gmra.mxu0 %v45
    %v414 = vpop.f32.mrf.mxu0
    %v415 = vadd.f32 0.0, %v414
    %v416 = vpop.f32.mrf.mxu0
    %417 = vdwg.mxu0
    %v418 = vpack.c.bf16 %v342, %v341
    %v419 = vpack.c.bf16 %v415, %v410
    %s420 = scalar_lea.vmem [#allocation2], 128
    %v421 = vld [vmem:[%s420] sm:$0xf]
    %v422 = vld [vmem:[%s420 + $0x4] sm:$0xf]
    %v423 = vld [vmem:[%s420 + $0x8] sm:$0xf]
    %v424 = vld [vmem:[%s420 + $0xc] sm:$0xf]
    %v425 = vld [vmem:[%s420 + $0x10] sm:$0xf]
    %v426 = vld [vmem:[%s420 + $0x14] sm:$0xf]
    %v427 = vld [vmem:[%s420 + $0x18] sm:$0xf]
    %v428 = vld [vmem:[%s420 + $0x1c] sm:$0xf]
    %v429 = vld [vmem:[%s420 + $0x20] sm:$0xf]
    %v430 = vld [vmem:[%s420 + $0x24] sm:$0xf]
    %v431 = vld [vmem:[%s420 + $0x28] sm:$0xf]
    %v432 = vld [vmem:[%s420 + $0x2c] sm:$0xf]
    %v433 = vld [vmem:[%s420 + $0x30] sm:$0xf]
    %v434 = vld [vmem:[%s420 + $0x34] sm:$0xf]
    %v435 = vld [vmem:[%s420 + $0x38] sm:$0xf]
    %v436 = vld [vmem:[%s420 + $0x3c] sm:$0xf]
    %v437 = vld [vmem:[%s420 + $0x40] sm:$0xf]
    %v438 = vld [vmem:[%s420 + $0x44] sm:$0xf]
    %v439 = vld [vmem:[%s420 + $0x48] sm:$0xf]
    %v440 = vld [vmem:[%s420 + $0x4c] sm:$0xf]
    %v441 = vld [vmem:[%s420 + $0x50] sm:$0xf]
    %v442 = vld [vmem:[%s420 + $0x54] sm:$0xf]
    %v443 = vld [vmem:[%s420 + $0x58] sm:$0xf]
    %v444 = vld [vmem:[%s420 + $0x5c] sm:$0xf]
    %v445 = vld [vmem:[%s420 + $0x60] sm:$0xf]
    %v446 = vld [vmem:[%s420 + $0x64] sm:$0xf]
    %v447 = vld [vmem:[%s420 + $0x68] sm:$0xf]
    %v448 = vld [vmem:[%s420 + $0x6c] sm:$0xf]
    %v449 = vld [vmem:[%s420 + $0x70] sm:$0xf]
    %v450 = vld [vmem:[%s420 + $0x74] sm:$0xf]
    %v451 = vld [vmem:[%s420 + $0x78] sm:$0xf]
    %v452 = vld [vmem:[%s420 + $0x7c] sm:$0xf]
    %v469 = vunpack.c.l.b16 %v437
    %v470 = vunpack.c.l.b16 %v438
    %v471 = vunpack.c.l.b16 %v439
    %v472 = vunpack.c.l.b16 %v440
    %v473 = vunpack.c.l.b16 %v441
    %v474 = vunpack.c.l.b16 %v442
    %v475 = vunpack.c.l.b16 %v443
    %v476 = vunpack.c.l.b16 %v444
    %v477 = vunpack.c.l.b16 %v445
    %v478 = vunpack.c.l.b16 %v446
    %v479 = vunpack.c.l.b16 %v447
    %v480 = vunpack.c.l.b16 %v448
    %v481 = vunpack.c.l.b16 %v449
    %v482 = vunpack.c.l.b16 %v450
    %v483 = vunpack.c.l.b16 %v451
    %v484 = vunpack.c.l.b16 %v452
    %v485 = vpack.c.b16 %v470, %v469
    %v486 = vpack.c.b16 %v472, %v471
    %v487 = vpack.c.b16 %v474, %v473
    %v488 = vpack.c.b16 %v476, %v475
    %v489 = vpack.c.b16 %v478, %v477
    %v490 = vpack.c.b16 %v480, %v479
    %v491 = vpack.c.b16 %v482, %v481
    %v492 = vpack.c.b16 %v484, %v483
    %501 = vmatprep.subr.bf16.mxu0 0
    %502 = vmatpush1.bf16.msra.mxu0 %v492
    %503 = vmatprep.subr.bf16.mxu0 0
    %504 = vmatpush1.bf16.msra.mxu0 %v491
    %505 = vmatprep.subr.bf16.mxu0 0
    %506 = vmatpush1.bf16.msra.mxu0 %v490
    %507 = vmatprep.subr.bf16.mxu0 0
    %508 = vmatpush1.bf16.msra.mxu0 %v489
    %509 = vmatprep.subr.bf16.mxu0 0
    %510 = vmatpush1.bf16.msra.mxu0 %v488
    %511 = vmatprep.subr.bf16.mxu0 0
    %512 = vmatpush1.bf16.msra.mxu0 %v487
    %513 = vmatprep.subr.bf16.mxu0 0
    %514 = vmatpush1.bf16.msra.mxu0 %v486
    %515 = vmatprep.subr.bf16.mxu0 0
    %516 = vmatpush1.bf16.msra.mxu0 %v485
    %517 = vmatprep.subr.bf16.mxu0 0
    %518 = vmatpush2.bf16.msra.mxu0 0
    %519 = vmatprep.subr.bf16.mxu0 0
    %520 = vmatpush2.bf16.msra.mxu0 0
    %521 = vmatprep.subr.bf16.mxu0 0
    %522 = vmatpush2.bf16.msra.mxu0 0
    %523 = vmatprep.subr.bf16.mxu0 0
    %524 = vmatpush2.bf16.msra.mxu0 0
    %525 = vmatprep.subr.bf16.mxu0 0
    %526 = vmatpush2.bf16.msra.mxu0 0
    %527 = vmatprep.subr.bf16.mxu0 0
    %528 = vmatpush2.bf16.msra.mxu0 0
    %529 = vmatprep.subr.bf16.mxu0 0
    %530 = vmatpush2.bf16.msra.mxu0 0
    %531 = vmatprep.subr.bf16.mxu0 0
    %532 = vmatpush2.bf16.msra.mxu0 0
    %533 = vmatprep.mubr.bf16.mxu0 0
    %534 = vmatmul.mubr.bf16.gmra.mxu0 %v418
    %v535 = vpop.f32.mrf.mxu0
    %v536 = vadd.f32 0.0, %v535
    %v537 = vpop.f32.mrf.mxu0
    %v538 = vpop.f32.mrf.mxu0
    %v539 = vadd.f32 0.0, %v538
    %v540 = vpop.f32.mrf.mxu0
    %541 = vdwg.mxu0
    %v558 = vunpack.c.l.b16 %v421
    %v559 = vunpack.c.l.b16 %v422
    %v560 = vunpack.c.l.b16 %v423
    %v561 = vunpack.c.l.b16 %v424
    %v562 = vunpack.c.l.b16 %v425
    %v563 = vunpack.c.l.b16 %v426
    %v564 = vunpack.c.l.b16 %v427
    %v565 = vunpack.c.l.b16 %v428
    %v566 = vunpack.c.l.b16 %v429
    %v567 = vunpack.c.l.b16 %v430
    %v568 = vunpack.c.l.b16 %v431
    %v569 = vunpack.c.l.b16 %v432
    %v570 = vunpack.c.l.b16 %v433
    %v571 = vunpack.c.l.b16 %v434
    %v572 = vunpack.c.l.b16 %v435
    %v573 = vunpack.c.l.b16 %v436
    %v574 = vpack.c.b16 %v559, %v558
    %v575 = vpack.c.b16 %v561, %v560
    %v576 = vpack.c.b16 %v563, %v562
    %v577 = vpack.c.b16 %v565, %v564
    %v578 = vpack.c.b16 %v567, %v566
    %v579 = vpack.c.b16 %v569, %v568
    %v580 = vpack.c.b16 %v571, %v570
    %v581 = vpack.c.b16 %v573, %v572
    %590 = vmatprep.subr.bf16.mxu0 0
    %591 = vmatpush1.bf16.msra.mxu0 %v581
    %592 = vmatprep.subr.bf16.mxu0 0
    %593 = vmatpush1.bf16.msra.mxu0 %v580
    %594 = vmatprep.subr.bf16.mxu0 0
    %595 = vmatpush1.bf16.msra.mxu0 %v579
    %596 = vmatprep.subr.bf16.mxu0 0
    %597 = vmatpush1.bf16.msra.mxu0 %v578
    %598 = vmatprep.subr.bf16.mxu0 0
    %599 = vmatpush1.bf16.msra.mxu0 %v577
    %600 = vmatprep.subr.bf16.mxu0 0
    %601 = vmatpush1.bf16.msra.mxu0 %v576
    %602 = vmatprep.subr.bf16.mxu0 0
    %603 = vmatpush1.bf16.msra.mxu0 %v575
    %604 = vmatprep.subr.bf16.mxu0 0
    %605 = vmatpush1.bf16.msra.mxu0 %v574
    %606 = vmatprep.subr.bf16.mxu0 0
    %607 = vmatpush2.bf16.msra.mxu0 0
    %608 = vmatprep.subr.bf16.mxu0 0
    %609 = vmatpush2.bf16.msra.mxu0 0
    %610 = vmatprep.subr.bf16.mxu0 0
    %611 = vmatpush2.bf16.msra.mxu0 0
    %612 = vmatprep.subr.bf16.mxu0 0
    %613 = vmatpush2.bf16.msra.mxu0 0
    %614 = vmatprep.subr.bf16.mxu0 0
    %615 = vmatpush2.bf16.msra.mxu0 0
    %616 = vmatprep.subr.bf16.mxu0 0
    %617 = vmatpush2.bf16.msra.mxu0 0
    %618 = vmatprep.subr.bf16.mxu0 0
    %619 = vmatpush2.bf16.msra.mxu0 0
    %620 = vmatprep.subr.bf16.mxu0 0
    %621 = vmatpush2.bf16.msra.mxu0 0
    %622 = vmatprep.mubr.bf16.mxu0 0
    %623 = vmatmul.mubr.bf16.gmra.mxu0 %v419
    %v624 = vpop.f32.mrf.mxu0
    %v625 = vadd.f32 %v536, %v624
    %v626 = vpop.f32.mrf.mxu0
    %v627 = vpop.f32.mrf.mxu0
    %v628 = vadd.f32 %v539, %v627
    %v629 = vpop.f32.mrf.mxu0
    %630 = vdwg.mxu0
    %v631 = vld [vmem:[%s3 + $0x1] sm:$0x1]
    %v632 = vlaneseq
    %v633 = vshrl.u32 %v632, 7
    %v634 = vsub.s32 0, %v633
    %v635 = vrot.slane %v631, %v634
    %v636 = vadd.f32 %v625, %v635
    %v637 = vadd.f32 %v628, %v635
    %v638 = vmax.f32 %v636, 0.0
    %v639 = vmax.f32 %v637, 0.0
    %v640 = vld [vmem:[%s4] sm:$0x3]
    %v642 = vsel %vm40, %v640, 0
    %644 = vmatprep.subr.mxu0 0.0
    %645 = vmatpush1.msra.mxu0 0.0
    %646 = vmatprep.subr.mxu0 0.0
    %647 = vmatpush1.msra.mxu0 0.0
    %648 = vmatprep.subr.mxu0 0.0
    %649 = vmatpush1.msra.mxu0 0.0
    %650 = vmatprep.subr.mxu0 0.0
    %651 = vmatpush1.msra.mxu0 0.0
    %652 = vmatprep.subr.mxu0 0.0
    %653 = vmatpush1.msra.mxu0 0.0
    %654 = vmatprep.subr.mxu0 0.0
    %655 = vmatpush1.msra.mxu0 0.0
    %656 = vmatprep.subr.mxu0 0.0
    %657 = vmatpush1.msra.mxu0 0.0
    %658 = vmatprep.subr.mxu0 0.0
    %659 = vmatpush1.msra.mxu0 0.0
    %660 = vmatprep.subr.mxu0 0.0
    %661 = vmatpush1.msra.mxu0 0.0
    %662 = vmatprep.subr.mxu0 0.0
    %663 = vmatpush1.msra.mxu0 0.0
    %664 = vmatprep.subr.mxu0 0.0
    %665 = vmatpush1.msra.mxu0 0.0
    %666 = vmatprep.subr.mxu0 0.0
    %667 = vmatpush1.msra.mxu0 0.0
    %668 = vmatprep.subr.mxu0 0.0
    %669 = vmatpush1.msra.mxu0 0.0
    %670 = vmatprep.subr.mxu0 0.0
    %671 = vmatpush1.msra.mxu0 0.0
    %672 = vmatprep.subr.mxu0 0.0
    %673 = vmatpush1.msra.mxu0 %v639
    %674 = vmatprep.subr.mxu0 0.0
    %675 = vmatpush1.msra.mxu0 %v638
    %676 = vmatprep.subr.mxu0 0.0
    %677 = vmatpush2.msra.mxu0 0.0
    %678 = vmatprep.subr.mxu0 0.0
    %679 = vmatpush2.msra.mxu0 0.0
    %680 = vmatprep.subr.mxu0 0.0
    %681 = vmatpush2.msra.mxu0 0.0
    %682 = vmatprep.subr.mxu0 0.0
    %683 = vmatpush2.msra.mxu0 0.0
    %684 = vmatprep.subr.mxu0 0.0
    %685 = vmatpush2.msra.mxu0 0.0
    %686 = vmatprep.subr.mxu0 0.0
    %687 = vmatpush2.msra.mxu0 0.0
    %688 = vmatprep.subr.mxu0 0.0
    %689 = vmatpush2.msra.mxu0 0.0
    %690 = vmatprep.subr.mxu0 0.0
    %691 = vmatpush2.msra.mxu0 0.0
    %692 = vmatprep.subr.mxu0 0.0
    %693 = vmatpush2.msra.mxu0 0.0
    %694 = vmatprep.subr.mxu0 0.0
    %695 = vmatpush2.msra.mxu0 0.0
    %696 = vmatprep.subr.mxu0 0.0
    %697 = vmatpush2.msra.mxu0 0.0
    %698 = vmatprep.subr.mxu0 0.0
    %699 = vmatpush2.msra.mxu0 0.0
    %700 = vmatprep.subr.mxu0 0.0
    %701 = vmatpush2.msra.mxu0 0.0
    %702 = vmatprep.subr.mxu0 0.0
    %703 = vmatpush2.msra.mxu0 0.0
    %704 = vmatprep.subr.mxu0 0.0
    %705 = vmatpush2.msra.mxu0 0.0
    %706 = vmatprep.subr.mxu0 0.0
    %707 = vmatpush2.msra.mxu0 0.0
    %708 = vmatprep.mubr.f32.mxu0 0.0
    %709 = vmatmul.mubr.f32.gmra.mxu0 %v642
    %v710 = vpop.f32.mrf.mxu0
    %v711 = vadd.f32 0.0, %v710
    %v712 = vpop.f32.mrf.mxu0
    %713 = vdwg.mxu0
    %v714 = vpack.c.bf16 %v711, %v711
    %s715 = scalar_lea.vmem [#allocation2], 256
    %v716 = vld [vmem:[%s715] sm:$0xf]
    %v717 = vld [vmem:[%s715 + $0x4] sm:$0xf]
    %v718 = vld [vmem:[%s715 + $0x8] sm:$0xf]
    %v719 = vld [vmem:[%s715 + $0xc] sm:$0xf]
    %v720 = vld [vmem:[%s715 + $0x10] sm:$0xf]
    %v721 = vld [vmem:[%s715 + $0x14] sm:$0xf]
    %v722 = vld [vmem:[%s715 + $0x18] sm:$0xf]
    %v723 = vld [vmem:[%s715 + $0x1c] sm:$0xf]
    %v724 = vld [vmem:[%s715 + $0x20] sm:$0xf]
    %v725 = vld [vmem:[%s715 + $0x24] sm:$0xf]
    %v726 = vld [vmem:[%s715 + $0x28] sm:$0xf]
    %v727 = vld [vmem:[%s715 + $0x2c] sm:$0xf]
    %v728 = vld [vmem:[%s715 + $0x30] sm:$0xf]
    %v729 = vld [vmem:[%s715 + $0x34] sm:$0xf]
    %v730 = vld [vmem:[%s715 + $0x38] sm:$0xf]
    %v731 = vld [vmem:[%s715 + $0x3c] sm:$0xf]
    %v732 = vld [vmem:[%s3 + $0x2] sm:$0x1]
    %v733 = vlaneseq
    %v734 = vshrl.u32 %v733, 7
    %v735 = vsub.s32 0, %v734
    %v736 = vrot.slane %v732, %v735
    %v753 = vunpack.c.l.b16 %v716
    %v754 = vunpack.c.l.b16 %v717
    %v755 = vunpack.c.l.b16 %v718
    %v756 = vunpack.c.l.b16 %v719
    %v757 = vunpack.c.l.b16 %v720
    %v758 = vunpack.c.l.b16 %v721
    %v759 = vunpack.c.l.b16 %v722
    %v760 = vunpack.c.l.b16 %v723
    %v761 = vunpack.c.l.b16 %v724
    %v762 = vunpack.c.l.b16 %v725
    %v763 = vunpack.c.l.b16 %v726
    %v764 = vunpack.c.l.b16 %v727
    %v765 = vunpack.c.l.b16 %v728
    %v766 = vunpack.c.l.b16 %v729
    %v767 = vunpack.c.l.b16 %v730
    %v768 = vunpack.c.l.b16 %v731
    %v769 = vpack.c.b16 %v754, %v753
    %v770 = vpack.c.b16 %v756, %v755
    %v771 = vpack.c.b16 %v758, %v757
    %v772 = vpack.c.b16 %v760, %v759
    %v773 = vpack.c.b16 %v762, %v761
    %v774 = vpack.c.b16 %v764, %v763
    %v775 = vpack.c.b16 %v766, %v765
    %v776 = vpack.c.b16 %v768, %v767
    %785 = vmatprep.subr.bf16.mxu0 0
    %786 = vmatpush1.bf16.msra.mxu0 %v776
    %787 = vmatprep.subr.bf16.mxu0 0
    %788 = vmatpush1.bf16.msra.mxu0 %v775
    %789 = vmatprep.subr.bf16.mxu0 0
    %790 = vmatpush1.bf16.msra.mxu0 %v774
    %791 = vmatprep.subr.bf16.mxu0 0
    %792 = vmatpush1.bf16.msra.mxu0 %v773
    %793 = vmatprep.subr.bf16.mxu0 0
    %794 = vmatpush1.bf16.msra.mxu0 %v772
    %795 = vmatprep.subr.bf16.mxu0 0
    %796 = vmatpush1.bf16.msra.mxu0 %v771
    %797 = vmatprep.subr.bf16.mxu0 0
    %798 = vmatpush1.bf16.msra.mxu0 %v770
    %799 = vmatprep.subr.bf16.mxu0 0
    %800 = vmatpush1.bf16.msra.mxu0 %v769
    %801 = vmatprep.subr.bf16.mxu0 0
    %802 = vmatpush2.bf16.msra.mxu0 0
    %803 = vmatprep.subr.bf16.mxu0 0
    %804 = vmatpush2.bf16.msra.mxu0 0
    %805 = vmatprep.subr.bf16.mxu0 0
    %806 = vmatpush2.bf16.msra.mxu0 0
    %807 = vmatprep.subr.bf16.mxu0 0
    %808 = vmatpush2.bf16.msra.mxu0 0
    %809 = vmatprep.subr.bf16.mxu0 0
    %810 = vmatpush2.bf16.msra.mxu0 0
    %811 = vmatprep.subr.bf16.mxu0 0
    %812 = vmatpush2.bf16.msra.mxu0 0
    %813 = vmatprep.subr.bf16.mxu0 0
    %814 = vmatpush2.bf16.msra.mxu0 0
    %815 = vmatprep.subr.bf16.mxu0 0
    %816 = vmatpush2.bf16.msra.mxu0 0
    %817 = vmatprep.mubr.bf16.mxu0 0
    %818 = vmatmul.mubr.bf16.gmra.mxu0 %v714
    %v819 = vpop.f32.mrf.mxu0
    %v820 = vadd.f32 %v736, %v819
    %v821 = vpop.f32.mrf.mxu0
    %v822 = vpop.f32.mrf.mxu0
    %v823 = vpop.f32.mrf.mxu0
    %824 = vdwg.mxu0
    %825 = vst [vmem:[#allocation5] sm:$0x3] %v820
    // Predicated region
    $region26: #{_gcn_forward_jit.1} parent=1 // pred_check
      _
    $region27: #{_gcn_forward_jit.1} parent=1 // pred_check_branch
      %827 = sbr.rel (0) target = $region29
    $region28: #{_gcn_forward_jit.1} parent=1 // pred_region
      %s829 = ssub.s32 32, 32
      %830 = vsyncadd [#allocation4], %s829
      %s832 = sshll.u32 [#allocation5], 4
      %s833 = int_to_ptr.vmem [resolvable:$true] %s832
      %835 = dma.vmem_to_hbm [thread:$0]  %s833, 32, %s5, [#allocation4]
    $region29: #{_gcn_forward_jit.1} parent=1 // pred_fallthru
      _
    // Predicated region
    $region30: #{_gcn_forward_jit.1} parent=1 // pred_check
      _
    $region31: #{_gcn_forward_jit.1} parent=1 // pred_check_branch
      %837 = sbr.rel (0) target = $region33
    $region32: #{_gcn_forward_jit.1} parent=1 // pred_region
      %838 = dma.done [#allocation4], 32
    $region33: #{_gcn_forward_jit.1} parent=1 // pred_fallthru
      _
    %839 = vsyncpa [#allocation3], 1
    %840 = vsyncpa [#allocation4], 1

</llo_original>
